<compile_context>
chip_gen: v7x
topology: tpu7x:2x2x1
jax: 0.10.0
libtpu: 0.0.40
codegen_flags: <defaults>
</compile_context>

<pallas_src>
import functools

import jax
import jax.numpy as jnp
from jax.experimental import pallas as pl
from jax.experimental.pallas import tpu as pltpu


def _round_up(x, m):
    return ((x + m - 1) // m) * m


def _cnn_block_kernel(x_ref, w_ref, shift_ref, o_ref, *,
                      tap_offsets, tile_m, negative_slope):
    # x_ref:     (1, M_in_pad, C_eff)       flattened padded image of one batch element
    # w_ref:     (n_taps, C_eff, Cout_pad)  per-tap weight matrices (BN scale pre-folded)
    # shift_ref: (1, Cout_pad) f32          folded BN shift = beta - mean * gamma / sqrt(var+eps)
    # o_ref:     (1, tile_m, Cout_pad)      output tile (compute/out dtype)
    align = tile_m & (-tile_m)              # largest power-of-two divisor of tile_m
    base = pl.multiple_of(pl.program_id(1) * tile_m, align)

    # Conv as n_taps shifted matmuls: out[p] = sum_t x[p + off_t] @ w[t]  (f32 accumulation).
    xv = x_ref[0, pl.ds(base + tap_offsets[0], tile_m), :]
    acc = jnp.dot(xv, w_ref[0], preferred_element_type=jnp.float32)
    for t in range(1, len(tap_offsets)):
        xv = x_ref[0, pl.ds(base + tap_offsets[t], tile_m), :]
        acc = acc + jnp.dot(xv, w_ref[t], preferred_element_type=jnp.float32)

    # Fused BN shift + LeakyReLU (scale already folded into the weights); single lane-dense store.
    y = acc + shift_ref[...]
    y = jnp.maximum(y, negative_slope * y)   # LeakyReLU, valid for 0 <= slope <= 1
    o_ref[0] = y.astype(o_ref.dtype)


def _vmem_limit_bytes(est_bytes):
    cap = 48 * 2 ** 20                       # conservative default, safe on v7x (64 MiB physical)
    try:
        info = pltpu.get_tpu_info()
        phys = getattr(info, "vmem_capacity_bytes", None)
        if phys:
            cap = int(0.70 * phys)           # ~89 MiB on v5e/v6e, ~45 MiB on v7x
    except Exception:
        pass
    return int(min(cap, max(16 * 2 ** 20, int(1.5 * est_bytes))))


def cnn_block_nhwc(x_nhwc, weight_oihw, gamma, beta, running_mean, running_var, *,
                   stride=1, padding=1, eps=1e-5, negative_slope=0.1,
                   tile_m=None, compute_dtype=jnp.bfloat16, out_dtype=None, pack_kw=None):
    """Conv2d(bias=False, stride=1) -> BatchNorm2d(eval) -> LeakyReLU; NHWC in / NHWC out."""
    assert stride == 1                       # TODO(synk): strided convolution not implemented
    assert 0.0 <= negative_slope <= 1.0
    N, H, W, Cin = x_nhwc.shape
    Cout, Cin_w, KH, KW = weight_oihw.shape
    assert Cin_w == Cin
    if out_dtype is None:
        out_dtype = compute_dtype

    Hp, Wp = H + 2 * padding, W + 2 * padding
    Ho, Wo = Hp - KH + 1, Wp - KW + 1
    W_row = _round_up(Wp, 8)                 # sublane-aligned row stride
    Cout_pad = _round_up(Cout, 128)

    # Small-Cin specialization: pack the KW taps into the contraction dim instead of zero-padding
    # Cin to 128 (duplicates input KW-fold, still far cheaper than round_up(Cin,128)/Cin-fold).
    if pack_kw is None:
        pack_kw = (KW * Cin) < _round_up(Cin, 128)

    # Fold BatchNorm (eval) into per-Cout scale/shift; fold the scale into the weights (in f32).
    inv_std = jax.lax.rsqrt(running_var.astype(jnp.float32) + eps)
    scale_v = gamma.astype(jnp.float32) * inv_std
    shift_v = beta.astype(jnp.float32) - running_mean.astype(jnp.float32) * scale_v
    shift = jnp.pad(shift_v, (0, Cout_pad - Cout)).reshape(1, Cout_pad)
    w_scaled = weight_oihw.astype(jnp.float32) * scale_v[:, None, None, None]   # (O, I, KH, KW)
    w_khkwio = jnp.transpose(w_scaled, (2, 3, 1, 0))                            # (KH, KW, I, O)

    if pack_kw:
        n_taps, C_eff = KH, KW * Cin
        tap_offsets = tuple(kh * W_row for kh in range(KH))          # all sublane-aligned
        w = w_khkwio.reshape(KH, KW * Cin, Cout)
        # Padded NHWC image with width W_row + KW - 1 so each kw-shifted window has width W_row.
        x = jnp.pad(x_nhwc, ((0, 0), (padding, padding),
                             (padding, W_row + KW - 1 - W - padding), (0, 0)))
        x = jnp.concatenate([x[:, :, kw:kw + W_row, :] for kw in range(KW)], axis=-1)
        x_flat = x.reshape(N, Hp * W_row, C_eff)
        max_off = (KH - 1) * W_row
    else:
        C_eff = _round_up(Cin, 128)
        n_taps = KH * KW
        tap_offsets = tuple(kh * W_row + kw for kh in range(KH) for kw in range(KW))
        w = w_khkwio.reshape(KH * KW, Cin, Cout)
        w = jnp.pad(w, ((0, 0), (0, C_eff - Cin), (0, 0)))
        x = jnp.pad(x_nhwc, ((0, 0), (padding, padding),
                             (padding, W_row - W - padding), (0, C_eff - Cin)))
        x_flat = x.reshape(N, Hp * W_row, C_eff)
        max_off = (KH - 1) * W_row + (KW - 1)

    w = jnp.pad(w, ((0, 0), (0, 0), (0, Cout_pad - Cout))).astype(compute_dtype)

    # Spatial tiling: conv computed at all W_row columns per output row (Wo valid + garbage
    # columns sliced away afterwards) so every tap is a contiguous, aligned slice.
    M_out = Ho * W_row
    if tile_m is None:
        tile_m = 1024 if Cout_pad <= 256 else (512 if Cout_pad <= 512 else 256)
    TM = _round_up(min(tile_m, _round_up(M_out, 8)), 8)
    if N == 1:                               # megacore occupancy: want >= 2 grid steps total
        while TM > 8 and -(-M_out // TM) < 2:
            TM = _round_up(TM // 2, 8)
    n_tiles = -(-M_out // TM)
    M_out_pad = n_tiles * TM
    M_in_pad = _round_up(max(Hp * W_row, M_out_pad + max_off), 8)
    x_flat = jnp.pad(x_flat, ((0, 0), (0, M_in_pad - Hp * W_row), (0, 0))).astype(compute_dtype)

    kernel = functools.partial(_cnn_block_kernel, tap_offsets=tap_offsets,
                               tile_m=TM, negative_slope=float(negative_slope))

    itemsize = jnp.dtype(compute_dtype).itemsize
    out_itemsize = jnp.dtype(out_dtype).itemsize
    flops = 2 * N * M_out_pad * n_taps * C_eff * Cout_pad
    bytes_accessed = (int(x_flat.size) * itemsize + int(w.size) * itemsize
                      + N * M_out_pad * Cout_pad * out_itemsize + Cout_pad * 4)
    cost = pl.CostEstimate(flops=flops, transcendentals=0, bytes_accessed=bytes_accessed)

    lane_eff = _round_up(C_eff, 128)         # VMEM lane padding of the minor dim
    est_vmem = (2 * M_in_pad * lane_eff * itemsize                      # double-buffered image
                + 2 * n_taps * _round_up(C_eff, 16) * Cout_pad * itemsize
                + 2 * TM * Cout_pad * out_itemsize                      # double-buffered out tile
                + 2 * TM * Cout_pad * 4                                 # f32 accumulator headroom
                + 4 * 8 * Cout_pad * 4)
    vmem_limit = _vmem_limit_bytes(est_vmem)

    out = pl.pallas_call(
        kernel,
        out_shape=jax.ShapeDtypeStruct((N, M_out_pad, Cout_pad), out_dtype),
        grid=(N, n_tiles),
        in_specs=[
            # Full padded image per batch element; reused across the inner (spatial) axis.
            pl.BlockSpec((1, M_in_pad, C_eff), lambda n, i: (n, 0, 0)),
            pl.BlockSpec((n_taps, C_eff, Cout_pad), lambda n, i: (0, 0, 0)),
            pl.BlockSpec((1, Cout_pad), lambda n, i: (0, 0)),
        ],
        out_specs=pl.BlockSpec((1, TM, Cout_pad), lambda n, i: (n, i, 0)),
        compiler_params=pltpu.CompilerParams(
            dimension_semantics=("parallel", "parallel"),
            vmem_limit_bytes=vmem_limit,
        ),
        cost_estimate=cost,
    )(x_flat, w, shift)

    # Drop M/channel padding and garbage columns; stay in NHWC so chained blocks avoid transposes.
    out = out[:, :M_out, :Cout].reshape(N, Ho, W_row, Cout)[:, :, :Wo, :]
    return out


def cnn_block(x_nchw, weight_oihw, gamma, beta, running_mean, running_var, **kwargs):
    """PyTorch-layout wrapper: NCHW in / NCHW out (transpose only at the network boundary)."""
    x_nhwc = jnp.transpose(x_nchw, (0, 2, 3, 1))
    y = cnn_block_nhwc(x_nhwc, weight_oihw, gamma, beta, running_mean, running_var, **kwargs)
    return jnp.transpose(y, (0, 3, 1, 2))


def _reference(x_nchw, weight_oihw, gamma, beta, running_mean, running_var,
               *, padding=1, eps=1e-5, negative_slope=0.1):
    conv = jax.lax.conv_general_dilated(
        x_nchw, weight_oihw, window_strides=(1, 1),
        padding=((padding, padding), (padding, padding)),
        dimension_numbers=("NCHW", "OIHW", "NCHW"),
    )
    inv_std = 1.0 / jnp.sqrt(running_var + eps)
    y = (conv - running_mean[None, :, None, None]) * (gamma * inv_std)[None, :, None, None] \
        + beta[None, :, None, None]
    return jnp.where(y > 0, y, negative_slope * y)


if __name__ == "__main__":
    key = jax.random.PRNGKey(0)
    k1, k2, k3, k4, k5, k6 = jax.random.split(key, 6)

    # Shapes consistent with CNNBlock(in_channels=4, out_channels=8, kernel_size=3, padding=1).
    N, Cin, H, W = 2, 4, 16, 16
    Cout, K = 8, 3

    x = jax.random.normal(k1, (N, Cin, H, W), jnp.float32)
    weight = jax.random.normal(k2, (Cout, Cin, K, K), jnp.float32) * 0.1
    gamma = 1.0 + 0.1 * jax.random.normal(k3, (Cout,), jnp.float32)
    beta = 0.1 * jax.random.normal(k4, (Cout,), jnp.float32)
    running_mean = 0.1 * jax.random.normal(k5, (Cout,), jnp.float32)
    running_var = jax.nn.softplus(jax.random.normal(k6, (Cout,), jnp.float32)) + 0.5

    ref = _reference(x, weight, gamma, beta, running_mean, running_var)

    # Production config: bf16 matmul + bf16 output store, kw-packed small-Cin path, multi-tile grid.
    out_bf16 = cnn_block(x, weight, gamma, beta, running_mean, running_var, tile_m=128)
    out_bf16 = jax.block_until_ready(out_bf16)
    assert out_bf16.shape == (N, Cout, H, W), out_bf16.shape
    err_bf16 = float(jnp.max(jnp.abs(out_bf16 - ref)))
    assert jnp.allclose(out_bf16, ref, atol=3e-2, rtol=3e-2), err_bf16

    # f32 compute + f32 store: tight numerical check of the fused conv + BN + LeakyReLU.
    out_f32 = cnn_block(x, weight, gamma, beta, running_mean, running_var,
                        compute_dtype=jnp.float32)
    out_f32 = jax.block_until_ready(out_f32)
    err_f32 = float(jnp.max(jnp.abs(out_f32 - ref)))
    assert jnp.allclose(out_f32, ref, atol=1e-3, rtol=1e-3), err_f32

    # Large-Cin (unpacked) path + N=1 megacore tile adjustment: layout/indexing check.
    kb1, kb2 = jax.random.split(jax.random.PRNGKey(1), 2)
    Nb, Cinb, Hb, Wb, Coutb = 1, 128, 8, 8, 8
    xb = jax.random.normal(kb1, (Nb, Cinb, Hb, Wb), jnp.float32)
    wb = jax.random.normal(kb2, (Coutb, Cinb, K, K), jnp.float32) * 0.1
    gb = jnp.ones((Coutb,), jnp.float32)
    bb = jnp.zeros((Coutb,), jnp.float32)
    mb = jnp.zeros((Coutb,), jnp.float32)
    vb = jnp.ones((Coutb,), jnp.float32)
    ref_b = _reference(xb, wb, gb, bb, mb, vb)
    out_b = cnn_block(xb, wb, gb, bb, mb, vb, compute_dtype=jnp.float32)
    out_b = jax.block_until_ready(out_b)
    assert out_b.shape == (Nb, Coutb, Hb, Wb), out_b.shape
    err_b = float(jnp.max(jnp.abs(out_b - ref_b)))
    assert jnp.allclose(out_b, ref_b, atol=2e-2, rtol=2e-2), err_b

    print("KERNEL_OK")
</pallas_src>

<mosaic_0001>
module attributes {stable_mosaic.version = 11 : i64} {
  func.func @_cnn_block_kernel(%arg0: i32, %arg1: i32, %arg2: memref<1x432x12xbf16, #tpu.memory_space<vmem>>, %arg3: memref<3x12x128xbf16, #tpu.memory_space<vmem>>, %arg4: memref<1x128xf32, #tpu.memory_space<vmem>>, %arg5: memref<1x128x128xbf16, #tpu.memory_space<vmem>>) attributes {dimension_semantics = [#tpu.dimension_semantics<parallel>, #tpu.dimension_semantics<parallel>], iteration_bounds = array<i64: 2, 3>, scalar_prefetch = 0 : i64, scratch_operands = 0 : i64, tpu.core_type = #tpu.core_type<tc>, window_params = [{transform_indices = @transform_0, window_bounds = array<i64: 1, 432, 12>}, {pipeline_mode = #tpu.pipeline_mode<synchronous>, transform_indices = @transform_1, window_bounds = array<i64: 3, 12, 128>}, {pipeline_mode = #tpu.pipeline_mode<synchronous>, transform_indices = @transform_2, window_bounds = array<i64: 1, 128>}, {transform_indices = @transform_3, window_bounds = array<i64: 1, 128, 128>}]} {
    %c128_i32 = arith.constant 128 : i32
    %0 = arith.muli %arg1, %c128_i32 : i32
    %1 = tpu.assume_multiple %0, 128 : i32
    %c0_i32 = arith.constant 0 : i32
    %2 = arith.addi %1, %c0_i32 : i32
    %c0 = arith.constant 0 : index
    %3 = arith.index_cast %2 : i32 to index
    %c0_0 = arith.constant 0 : index
    %4 = vector.load %arg2[%c0, %3, %c0_0] : memref<1x432x12xbf16, #tpu.memory_space<vmem>>, vector<1x128x12xbf16>
    %5 = vector.shape_cast %4 : vector<1x128x12xbf16> to vector<128x12xbf16>
    %c0_1 = arith.constant 0 : index
    %c0_2 = arith.constant 0 : index
    %c0_3 = arith.constant 0 : index
    %6 = vector.load %arg3[%c0_1, %c0_2, %c0_3] : memref<3x12x128xbf16, #tpu.memory_space<vmem>>, vector<1x12x128xbf16>
    %7 = vector.shape_cast %6 : vector<1x12x128xbf16> to vector<12x128xbf16>
    %cst = arith.constant dense<0.000000e+00> : vector<128x128xf32>
    %8 = tpu.matmul %5, %7, %cst {dimension_numbers = #tpu.dot_dimension_numbers<[1], [0], [0], [1], [0, 0, 1, 1], [], []>} : vector<128x12xbf16>, vector<12x128xbf16>, vector<128x128xf32> -> vector<128x128xf32>
    %c24_i32 = arith.constant 24 : i32
    %9 = arith.addi %1, %c24_i32 : i32
    %c0_4 = arith.constant 0 : index
    %10 = arith.index_cast %9 : i32 to index
    %c0_5 = arith.constant 0 : index
    %11 = vector.load %arg2[%c0_4, %10, %c0_5] : memref<1x432x12xbf16, #tpu.memory_space<vmem>>, vector<1x128x12xbf16>
    %12 = vector.shape_cast %11 : vector<1x128x12xbf16> to vector<128x12xbf16>
    %c1 = arith.constant 1 : index
    %c0_6 = arith.constant 0 : index
    %c0_7 = arith.constant 0 : index
    %13 = vector.load %arg3[%c1, %c0_6, %c0_7] : memref<3x12x128xbf16, #tpu.memory_space<vmem>>, vector<1x12x128xbf16>
    %14 = vector.shape_cast %13 : vector<1x12x128xbf16> to vector<12x128xbf16>
    %cst_8 = arith.constant dense<0.000000e+00> : vector<128x128xf32>
    %15 = tpu.matmul %12, %14, %cst_8 {dimension_numbers = #tpu.dot_dimension_numbers<[1], [0], [0], [1], [0, 0, 1, 1], [], []>} : vector<128x12xbf16>, vector<12x128xbf16>, vector<128x128xf32> -> vector<128x128xf32>
    %16 = arith.addf %8, %15 : vector<128x128xf32>
    %c48_i32 = arith.constant 48 : i32
    %17 = arith.addi %1, %c48_i32 : i32
    %c0_9 = arith.constant 0 : index
    %18 = arith.index_cast %17 : i32 to index
    %c0_10 = arith.constant 0 : index
    %19 = vector.load %arg2[%c0_9, %18, %c0_10] : memref<1x432x12xbf16, #tpu.memory_space<vmem>>, vector<1x128x12xbf16>
    %20 = vector.shape_cast %19 : vector<1x128x12xbf16> to vector<128x12xbf16>
    %c2 = arith.constant 2 : index
    %c0_11 = arith.constant 0 : index
    %c0_12 = arith.constant 0 : index
    %21 = vector.load %arg3[%c2, %c0_11, %c0_12] : memref<3x12x128xbf16, #tpu.memory_space<vmem>>, vector<1x12x128xbf16>
    %22 = vector.shape_cast %21 : vector<1x12x128xbf16> to vector<12x128xbf16>
    %cst_13 = arith.constant dense<0.000000e+00> : vector<128x128xf32>
    %23 = tpu.matmul %20, %22, %cst_13 {dimension_numbers = #tpu.dot_dimension_numbers<[1], [0], [0], [1], [0, 0, 1, 1], [], []>} : vector<128x12xbf16>, vector<12x128xbf16>, vector<128x128xf32> -> vector<128x128xf32>
    %24 = arith.addf %16, %23 : vector<128x128xf32>
    %c0_14 = arith.constant 0 : index
    %c0_15 = arith.constant 0 : index
    %25 = vector.load %arg4[%c0_14, %c0_15] : memref<1x128xf32, #tpu.memory_space<vmem>>, vector<1x128xf32>
    %26 = vector.broadcast %25 : vector<1x128xf32> to vector<128x128xf32>
    %27 = arith.addf %24, %26 : vector<128x128xf32>
    %cst_16 = arith.constant 1.000000e-01 : f32
    %28 = vector.broadcast %cst_16 : f32 to vector<128x128xf32>
    %29 = arith.mulf %28, %27 : vector<128x128xf32>
    %30 = arith.maximumf %27, %29 : vector<128x128xf32>
    %31 = arith.truncf %30 : vector<128x128xf32> to vector<128x128xbf16>
    %c0_17 = arith.constant 0 : index
    %c0_18 = arith.constant 0 : index
    %c0_19 = arith.constant 0 : index
    %32 = vector.load %arg5[%c0_17, %c0_18, %c0_19] : memref<1x128x128xbf16, #tpu.memory_space<vmem>>, vector<1x128x128xbf16>
    %33 = vector.shape_cast %32 : vector<1x128x128xbf16> to vector<128x128xbf16>
    %34 = vector.shape_cast %31 : vector<128x128xbf16> to vector<1x128x128xbf16>
    tpu.vector_store %arg5[%c0_17, %c0_18, %c0_19], %34 {strides = array<i32>} : memref<1x128x128xbf16, #tpu.memory_space<vmem>>, vector<1x128x128xbf16>,
    return
  }
  func.func @transform_0(%arg0: i32, %arg1: i32) -> (i32, i32, i32) {
    %c0_i32 = arith.constant 0 : i32
    %c0_i32_0 = arith.constant 0 : i32
    %c0_i32_1 = arith.constant 0 : i32
    return %arg0, %c0_i32, %c0_i32_0 : i32, i32, i32
  }
  func.func @transform_1(%arg0: i32, %arg1: i32) -> (i32, i32, i32) {
    %c0_i32 = arith.constant 0 : i32
    %c0_i32_0 = arith.constant 0 : i32
    %c0_i32_1 = arith.constant 0 : i32
    %c0_i32_2 = arith.constant 0 : i32
    return %c0_i32, %c0_i32_0, %c0_i32_1 : i32, i32, i32
  }
  func.func @transform_2(%arg0: i32, %arg1: i32) -> (i32, i32) {
    %c0_i32 = arith.constant 0 : i32
    %c0_i32_0 = arith.constant 0 : i32
    %c0_i32_1 = arith.constant 0 : i32
    return %c0_i32, %c0_i32_0 : i32, i32
  }
  func.func @transform_3(%arg0: i32, %arg1: i32) -> (i32, i32, i32) {
    %c0_i32 = arith.constant 0 : i32
    %c0_i32_0 = arith.constant 0 : i32
    return %arg0, %arg1, %c0_i32 : i32, i32, i32
  }
}

</mosaic_0001>

<llo_original>
// kernel: tpu_custom_call.1
$region0: #{tpu_custom_call.1}
  #allocation0 [shape = 'u32[]', space=smem, size = 0x4, offset = 0x4, fixed_abs, tag = 'smem constant byte address 0x4 - core index']
  #allocation1 [shape = 'u32[144,128]{1,0:T(1,128)}', space=vmem, size = 0x12000, scoped, tag = 'internal scratch']
  %s0 = inlined_call_operand.vmem [shape: bf16[2,432,12], index: 0, kind: input, shape index: {}]
  %s1 = inlined_call_operand.vmem [shape: bf16[3,12,128], index: 1, kind: input, shape index: {}]
  %s2 = inlined_call_operand.vmem [shape: f32[1,128], index: 2, kind: input, shape index: {}]
  %s3 = inlined_call_operand.hbm [shape: bf16[2,384,128], index: 3, kind: output, shape index: {}]
  %s4 = sld [smem:[#allocation0]]
  $region45: #{tpu_custom_call.1} parent=0
    _
  %s6 = ssub.s32 1, %s4
  %s7 = scalar_select 0, %s6, %s4
  $region1: #{tpu_custom_call.1} parent=0
    #allocation2 [shape = 'u8[65536]{0}', space=vmem, size = 0x10000, scoped, tag = 'output window, operand 0']
    #allocation3 [shape = 's32[2]{0}', space=sflag, size = 0x8, scoped, tag = 'scoped memory for tpu_custom_call.1']
    %8 = vsyncpa [#allocation3], 0
    %s9 = scalar_lea.sflag [#allocation3], 1
    %10 = vsyncpa %s9, 0
    loop: start=0, step=1, limit=8
    $region2: #{tpu_custom_call.1} parent=1 // loop_pre_header
      _
    $region3: #{tpu_custom_call.1} parent=1 // loop_header
      %s12 = sphi 0, %s16
      %p13 = scmp.ge.s32.totalorder %s12, 8
      %s19 = sphi 0, %s31
      %s20 = sphi 0, %s27
      %s21 = sphi 0, %s19
      %s22 = sphi 0, %s20
      %s23 = sphi 0, %s21
      %s24 = sphi 0, %s22
      %s34 = sphi 0, %s36
      %s37 = sphi 0, %s34
      %s38 = sphi 0, %s37
      %s54 = sphi 0, %s38
      %s58 = sphi 0, %s58
      %s60 = sphi 0, %s58
      %s61 = sphi 0, %s60
      %s75 = sphi 0, %s61
      %s79 = sphi 0, %s79
      %s81 = sphi 0, %s79
      %s82 = sphi 0, %s81
      %s96 = sphi 0, %s82
      %s104 = sphi 0, %s106
      %s107 = sphi 0, %s104
      %s108 = sphi 0, %s107
      %s124 = sphi 0, %s108
    $region4: #{tpu_custom_call.1} parent=1 // loop_header_branch
      %15 = sbr.rel (%p13) target = $region8
    $region5: #{tpu_custom_call.1} parent=1 // loop_body
      %s17 = ssub.s32 %s12, 1
      %s18 = ssub.s32 %s12, 2
      %s25 = sadd.s32 1, %s20
      %p26 = scmp.ge.s32.totalorder %s25, 3
      %s27 = scalar_select %p26, 0, %s25
      %s28 = sadd.s32 1, %s19
      %s29 = scalar_select %p26, %s28, %s19
      %p30 = scmp.ge.s32.totalorder %s29, 2
      %s31 = scalar_select %p30, 0, %s29
      %s32 = ssub.s32 %s19, %s31
      %p33 = scmp.eq.s32.totalorder %s32, 0
      %s35 = sadd.s32 %s34, 1
      %s36 = scalar_select %p33, %s34, %s35
      %p39 = pneg %p33
      %p40 = scmp.eq.s32.totalorder %s12, 5
      %p41 = por %p39, %p40
      %p42 = scmp.ne.s32.totalorder %s34, %s37
      %p43 = scmp.eq.s32.totalorder %s12, 0
      %p44 = por %p42, %p43
      %p45 = scmp.ne.s32.totalorder %s34, %s37
      %p46 = scmp.eq.s32.totalorder %s17, 5
      %p47 = por %p45, %p46
      %p48 = scmp.ne.s32.totalorder %s37, %s38
      %p49 = scmp.eq.s32.totalorder %s17, 0
      %p50 = por %p48, %p49
      %p51 = scmp.ne.s32.totalorder %s37, %s38
      %p52 = scmp.eq.s32.totalorder %s18, 5
      %p53 = por %p51, %p52
      %p55 = scmp.ne.s32.totalorder %s38, %s54
      %p56 = scmp.eq.s32.totalorder %s18, 0
      %p57 = por %p55, %p56
      %s59 = sadd.s32 %s58, 1
      %p62 = scmp.eq.s32.totalorder %s12, 5
      %p63 = scmp.ne.s32.totalorder %s58, %s60
      %p64 = scmp.eq.s32.totalorder %s12, 0
      %p65 = por %p63, %p64
      %p66 = scmp.ne.s32.totalorder %s58, %s60
      %p67 = scmp.eq.s32.totalorder %s17, 5
      %p68 = por %p66, %p67
      %p69 = scmp.ne.s32.totalorder %s60, %s61
      %p70 = scmp.eq.s32.totalorder %s17, 0
      %p71 = por %p69, %p70
      %p72 = scmp.ne.s32.totalorder %s60, %s61
      %p73 = scmp.eq.s32.totalorder %s18, 5
      %p74 = por %p72, %p73
      %p76 = scmp.ne.s32.totalorder %s61, %s75
      %p77 = scmp.eq.s32.totalorder %s18, 0
      %p78 = por %p76, %p77
      %s80 = sadd.s32 %s79, 1
      %p83 = scmp.eq.s32.totalorder %s12, 5
      %p84 = scmp.ne.s32.totalorder %s79, %s81
      %p85 = scmp.eq.s32.totalorder %s12, 0
      %p86 = por %p84, %p85
      %p87 = scmp.ne.s32.totalorder %s79, %s81
      %p88 = scmp.eq.s32.totalorder %s17, 5
      %p89 = por %p87, %p88
      %p90 = scmp.ne.s32.totalorder %s81, %s82
      %p91 = scmp.eq.s32.totalorder %s17, 0
      %p92 = por %p90, %p91
      %p93 = scmp.ne.s32.totalorder %s81, %s82
      %p94 = scmp.eq.s32.totalorder %s18, 5
      %p95 = por %p93, %p94
      %p97 = scmp.ne.s32.totalorder %s82, %s96
      %p98 = scmp.eq.s32.totalorder %s18, 0
      %p99 = por %p97, %p98
      %s100 = ssub.s32 %s19, %s31
      %s101 = ssub.s32 %s20, %s27
      %s102 = sor.u32 %s100, %s101
      %p103 = scmp.eq.s32.totalorder %s102, 0
      %s105 = sadd.s32 %s104, 1
      %s106 = scalar_select %p103, %s104, %s105
      %p109 = pneg %p103
      %p110 = scmp.eq.s32.totalorder %s12, 5
      %p111 = por %p109, %p110
      %p112 = scmp.ne.s32.totalorder %s104, %s107
      %p113 = scmp.eq.s32.totalorder %s12, 0
      %p114 = por %p112, %p113
      %p115 = scmp.ne.s32.totalorder %s104, %s107
      %p116 = scmp.eq.s32.totalorder %s17, 5
      %p117 = por %p115, %p116
      %p118 = scmp.ne.s32.totalorder %s107, %s108
      %p119 = scmp.eq.s32.totalorder %s17, 0
      %p120 = por %p118, %p119
      %p121 = scmp.ne.s32.totalorder %s107, %s108
      %p122 = scmp.eq.s32.totalorder %s18, 5
      %p123 = por %p121, %p122
      %p125 = scmp.ne.s32.totalorder %s108, %s124
      %p126 = scmp.eq.s32.totalorder %s18, 0
      %p127 = por %p125, %p126
      %p128 = scmp.le.s32.totalorder 1, %s12
      %p129 = scmp.lt.s32.totalorder %s12, 7
      %p130 = pnand %p128, %p129
      %p131 = pneg %p130
      // Predicated region
      $region9: #{tpu_custom_call.1} parent=5 // pred_check
        _
      $region10: #{tpu_custom_call.1} parent=5 // pred_check_branch
        %133 = sbr.rel (%p130) target = $region12
      $region11: #{tpu_custom_call.1} parent=5 // pred_region
        %s134 = ssub.s32 %s12, 1
        // Predicated region
        $region13: #{tpu_custom_call.1} parent=11 // pred_check
          %p135 = pneg %p71
        $region14: #{tpu_custom_call.1} parent=11 // pred_check_branch
          %137 = sbr.rel (%p135) target = $region16
        $region15: #{tpu_custom_call.1} parent=11 // pred_region
          _
        $region16: #{tpu_custom_call.1} parent=11 // pred_fallthru
          _
        // Predicated region
        $region17: #{tpu_custom_call.1} parent=11 // pred_check
          %p138 = pneg %p92
        $region18: #{tpu_custom_call.1} parent=11 // pred_check_branch
          %140 = sbr.rel (%p138) target = $region20
        $region19: #{tpu_custom_call.1} parent=11 // pred_region
          _
        $region20: #{tpu_custom_call.1} parent=11 // pred_fallthru
          _
      $region12: #{tpu_custom_call.1} parent=5 // pred_fallthru
        _
      %p141 = scmp.lt.s32.totalorder %s12, 6
      // Predicated region
      $region21: #{tpu_custom_call.1} parent=5 // pred_check
        %p142 = pneg %p141
      $region22: #{tpu_custom_call.1} parent=5 // pred_check_branch
        %144 = sbr.rel (%p142) target = $region24
      $region23: #{tpu_custom_call.1} parent=5 // pred_region
        // Predicated region
        $region25: #{tpu_custom_call.1} parent=23 // pred_check
          %p145 = pneg %p44
        $region26: #{tpu_custom_call.1} parent=23 // pred_check_branch
          %147 = sbr.rel (%p145) target = $region28
        $region27: #{tpu_custom_call.1} parent=23 // pred_region
          %p148 = scmp.lt.s32.totalorder %s19, 1
          %s149 = scalar_select %p148, %s19, 1
          %s150 = smul.addr %s149, 54
          %s151 = smul.addr %s150, 4
          %s152 = scalar_lea.vmem %s0, %s151
        $region28: #{tpu_custom_call.1} parent=23 // pred_fallthru
          _
      $region24: #{tpu_custom_call.1} parent=5 // pred_fallthru
        _
      %p153 = scmp.le.s32.totalorder 1, %s12
      %p154 = scmp.lt.s32.totalorder %s12, 7
      %p155 = pnand %p153, %p154
      %p156 = pneg %p155
      // Predicated region
      $region29: #{tpu_custom_call.1} parent=5 // pred_check
        _
      $region30: #{tpu_custom_call.1} parent=5 // pred_check_branch
        %158 = sbr.rel (%p155) target = $region32
      $region31: #{tpu_custom_call.1} parent=5 // pred_region
        %s159 = ssub.s32 %s12, 1
        %p160 = scmp.lt.s32.totalorder %s21, 1
        %s161 = scalar_select %p160, %s21, 1
        %s162 = smul.addr %s161, 54
        %s163 = smul.addr %s162, 4
        %s164 = scalar_lea.vmem %s0, %s163
        %p165 = pneg %p50
        %p166 = pneg %p47
        %p167 = pneg %p71
        %p168 = pneg %p68
        %p169 = pneg %p92
        %p170 = pneg %p89
        %p171 = pneg %p120
        %p172 = pneg %p117
        %s173 = sand.u32 %s107, 1
        %s174 = scalar_lea.sflag [#allocation3], %s173
        %s175 = sand.u32 %s107, 1
        %s176 = smul.addr %s175, 64
        %s177 = scalar_lea.vmem [#allocation2], %s176
        %p178 = scmp.lt.s32.totalorder %s21, 1
        %s179 = scalar_select %p178, %s21, 1
        %s180 = smul.addr %s179, 54
        %s181 = smul.addr %s180, 4
        %s182 = scalar_lea.vmem %s0, %s181
        %s183 = smul.u32 16, %s22
        %s185 = smul.u32 %s22, 128
        %s186 = sshra.s32 %s185, 3
        %s187 = sand.u32 %s185, 7
        %s188 = smul.addr %s186, 4
        %s189 = scalar_lea.vmem %s182, %s188
        %v190 = vld [vmem:[%s189] sm:$0xf]
        %v191 = vld [vmem:[%s189 + $0x4] sm:$0xf]
        %v192 = vld [vmem:[%s189 + $0x8] sm:$0xf]
        %v193 = vld [vmem:[%s189 + $0xc] sm:$0xf]
        %v194 = vld [vmem:[%s189 + $0x10] sm:$0xf]
        %v195 = vld [vmem:[%s189 + $0x14] sm:$0xf]
        %v196 = vld [vmem:[%s189 + $0x18] sm:$0xf]
        %v197 = vld [vmem:[%s189 + $0x1c] sm:$0xf]
        %v198 = vld [vmem:[%s189 + $0x20] sm:$0xf]
        %v199 = vld [vmem:[%s189 + $0x24] sm:$0xf]
        %v200 = vld [vmem:[%s189 + $0x28] sm:$0xf]
        %v201 = vld [vmem:[%s189 + $0x2c] sm:$0xf]
        %v202 = vld [vmem:[%s189 + $0x30] sm:$0xf]
        %v203 = vld [vmem:[%s189 + $0x34] sm:$0xf]
        %v204 = vld [vmem:[%s189 + $0x38] sm:$0xf]
        %v205 = vld [vmem:[%s189 + $0x3c] sm:$0xf]
        %v206 = vld [vmem:[%s1] sm:$0xf]
        %v207 = vld [vmem:[%s1 + $0x4] sm:$0x3]
        %s208 = sadd.s32 %s185, 24
        %s209 = sshra.s32 %s208, 3
        %s210 = sand.u32 %s208, 7
        %s211 = smul.addr %s209, 4
        %s212 = scalar_lea.vmem %s182, %s211
        %v213 = vld [vmem:[%s212] sm:$0xf]
        %v214 = vld [vmem:[%s212 + $0x4] sm:$0xf]
        %v215 = vld [vmem:[%s212 + $0x8] sm:$0xf]
        %v216 = vld [vmem:[%s212 + $0xc] sm:$0xf]
        %v217 = vld [vmem:[%s212 + $0x10] sm:$0xf]
        %v218 = vld [vmem:[%s212 + $0x14] sm:$0xf]
        %v219 = vld [vmem:[%s212 + $0x18] sm:$0xf]
        %v220 = vld [vmem:[%s212 + $0x1c] sm:$0xf]
        %v221 = vld [vmem:[%s212 + $0x20] sm:$0xf]
        %v222 = vld [vmem:[%s212 + $0x24] sm:$0xf]
        %v223 = vld [vmem:[%s212 + $0x28] sm:$0xf]
        %v224 = vld [vmem:[%s212 + $0x2c] sm:$0xf]
        %v225 = vld [vmem:[%s212 + $0x30] sm:$0xf]
        %v226 = vld [vmem:[%s212 + $0x34] sm:$0xf]
        %v227 = vld [vmem:[%s212 + $0x38] sm:$0xf]
        %v228 = vld [vmem:[%s212 + $0x3c] sm:$0xf]
        %s229 = scalar_lea.vmem %s1, 8
        %v230 = vld [vmem:[%s229] sm:$0xf]
        %v231 = vld [vmem:[%s229 + $0x4] sm:$0x3]
        %v248 = vunpack.c.l.b16 %v213
        %v249 = vunpack.c.l.b16 %v214
        %v250 = vunpack.c.l.b16 %v215
        %v251 = vunpack.c.l.b16 %v216
        %v252 = vunpack.c.l.b16 %v217
        %v253 = vunpack.c.l.b16 %v218
        %v254 = vunpack.c.l.b16 %v219
        %v255 = vunpack.c.l.b16 %v220
        %v256 = vunpack.c.l.b16 %v221
        %v257 = vunpack.c.l.b16 %v222
        %v258 = vunpack.c.l.b16 %v223
        %v259 = vunpack.c.l.b16 %v224
        %v260 = vunpack.c.l.b16 %v225
        %v261 = vunpack.c.l.b16 %v226
        %v262 = vunpack.c.l.b16 %v227
        %v263 = vunpack.c.l.b16 %v228
        %v264 = vpack.c.b16 %v249, %v248
        %v265 = vpack.c.b16 %v251, %v250
        %v266 = vpack.c.b16 %v253, %v252
        %v267 = vpack.c.b16 %v255, %v254
        %v268 = vpack.c.b16 %v257, %v256
        %v269 = vpack.c.b16 %v259, %v258
        %v270 = vpack.c.b16 %v261, %v260
        %v271 = vpack.c.b16 %v263, %v262
        %v274 = vunpack.c.l.b16 %v230
        %v275 = vunpack.c.l.b16 %v231
        %v276 = vpack.c.b16 %v275, %v274
        %vm277 = vcmask 97280
        %v279 = vsel %vm277, %v264, 0
        %v282 = vsel %vm277, %v265, 0
        %v285 = vsel %vm277, %v266, 0
        %v288 = vsel %vm277, %v267, 0
        %v291 = vsel %vm277, %v268, 0
        %v294 = vsel %vm277, %v269, 0
        %v297 = vsel %vm277, %v270, 0
        %v300 = vsel %vm277, %v271, 0
        %vm302 = vcmask 1045504
        %v304 = vsel %vm302, %v276, 0
        %306 = vmatprep.subr.bf16.mxu0 0
        %307 = vmatpush1.bf16.msra.mxu0 %v304
        %308 = vmatprep.subr.bf16.mxu0 0
        %309 = vmatpush1.bf16.msra.mxu0 0
        %310 = vmatprep.subr.bf16.mxu0 0
        %311 = vmatpush1.bf16.msra.mxu0 0
        %312 = vmatprep.subr.bf16.mxu0 0
        %313 = vmatpush1.bf16.msra.mxu0 0
        %314 = vmatprep.subr.bf16.mxu0 0
        %315 = vmatpush1.bf16.msra.mxu0 0
        %316 = vmatprep.subr.bf16.mxu0 0
        %317 = vmatpush1.bf16.msra.mxu0 0
        %318 = vmatprep.subr.bf16.mxu0 0
        %319 = vmatpush1.bf16.msra.mxu0 0
        %320 = vmatprep.subr.bf16.mxu0 0
        %321 = vmatpush1.bf16.msra.mxu0 0
        %322 = vmatprep.subr.bf16.mxu0 0
        %323 = vmatpush1.bf16.msra.mxu0 0
        %324 = vmatprep.subr.bf16.mxu0 0
        %325 = vmatpush1.bf16.msra.mxu0 0
        %326 = vmatprep.subr.bf16.mxu0 0
        %327 = vmatpush1.bf16.msra.mxu0 0
        %328 = vmatprep.subr.bf16.mxu0 0
        %329 = vmatpush1.bf16.msra.mxu0 0
        %330 = vmatprep.subr.bf16.mxu0 0
        %331 = vmatpush1.bf16.msra.mxu0 0
        %332 = vmatprep.subr.bf16.mxu0 0
        %333 = vmatpush1.bf16.msra.mxu0 0
        %334 = vmatprep.subr.bf16.mxu0 0
        %335 = vmatpush1.bf16.msra.mxu0 0
        %336 = vmatprep.subr.bf16.mxu0 0
        %337 = vmatpush1.bf16.msra.mxu0 0
        %338 = vmatprep.mubr.bf16.mxu0 0
        %339 = vmatmul.mubr.bf16.gmra.mrb[0].mxu0 %v279
        %v340 = vpop.f32.mrb[0].mxu0
        %v341 = vadd.f32 0.0, %v340
        %v342 = vpop.f32.mrb[0].mxu0
        %v343 = vpop.f32.mrb[0].mxu0
        %v344 = vadd.f32 0.0, %v343
        %v345 = vpop.f32.mrb[0].mxu0
        %346 = vmatprep.mubr.bf16.mxu0 0
        %347 = vmatmul.mubr.bf16.gmra.mrb[0].mxu0 %v282
        %v348 = vpop.f32.mrb[0].mxu0
        %v349 = vadd.f32 0.0, %v348
        %v350 = vpop.f32.mrb[0].mxu0
        %v351 = vpop.f32.mrb[0].mxu0
        %v352 = vadd.f32 0.0, %v351
        %v353 = vpop.f32.mrb[0].mxu0
        %354 = vmatprep.mubr.bf16.mxu0 0
        %355 = vmatmul.mubr.bf16.gmra.mrb[0].mxu0 %v285
        %v356 = vpop.f32.mrb[0].mxu0
        %v357 = vadd.f32 0.0, %v356
        %v358 = vpop.f32.mrb[0].mxu0
        %v359 = vpop.f32.mrb[0].mxu0
        %v360 = vadd.f32 0.0, %v359
        %v361 = vpop.f32.mrb[0].mxu0
        %362 = vmatprep.mubr.bf16.mxu0 0
        %363 = vmatmul.mubr.bf16.gmra.mrb[0].mxu0 %v288
        %v364 = vpop.f32.mrb[0].mxu0
        %v365 = vadd.f32 0.0, %v364
        %v366 = vpop.f32.mrb[0].mxu0
        %v367 = vpop.f32.mrb[0].mxu0
        %v368 = vadd.f32 0.0, %v367
        %v369 = vpop.f32.mrb[0].mxu0
        %370 = vmatprep.mubr.bf16.mxu0 0
        %371 = vmatmul.mubr.bf16.gmra.mrb[0].mxu0 %v291
        %v372 = vpop.f32.mrb[0].mxu0
        %v373 = vadd.f32 0.0, %v372
        %v374 = vpop.f32.mrb[0].mxu0
        %v375 = vpop.f32.mrb[0].mxu0
        %v376 = vadd.f32 0.0, %v375
        %v377 = vpop.f32.mrb[0].mxu0
        %378 = vmatprep.mubr.bf16.mxu0 0
        %379 = vmatmul.mubr.bf16.gmra.mrb[0].mxu0 %v294
        %v380 = vpop.f32.mrb[0].mxu0
        %v381 = vadd.f32 0.0, %v380
        %v382 = vpop.f32.mrb[0].mxu0
        %v383 = vpop.f32.mrb[0].mxu0
        %v384 = vadd.f32 0.0, %v383
        %v385 = vpop.f32.mrb[0].mxu0
        %386 = vmatprep.mubr.bf16.mxu0 0
        %387 = vmatmul.mubr.bf16.gmra.mrb[0].mxu0 %v297
        %v388 = vpop.f32.mrb[0].mxu0
        %v389 = vadd.f32 0.0, %v388
        %v390 = vpop.f32.mrb[0].mxu0
        %v391 = vpop.f32.mrb[0].mxu0
        %v392 = vadd.f32 0.0, %v391
        %v393 = vpop.f32.mrb[0].mxu0
        %394 = vmatprep.mubr.bf16.mxu0 0
        %395 = vmatmul.mubr.bf16.gmra.mrb[0].mxu0 %v300
        %v396 = vpop.f32.mrb[0].mxu0
        %v397 = vadd.f32 0.0, %v396
        %v398 = vpop.f32.mrb[0].mxu0
        %v399 = vpop.f32.mrb[0].mxu0
        %v400 = vadd.f32 0.0, %v399
        %v401 = vpop.f32.mrb[0].mxu0
        %402 = vdwg.mxu0
        %v419 = vunpack.c.l.b16 %v190
        %v420 = vunpack.c.l.b16 %v191
        %v421 = vunpack.c.l.b16 %v192
        %v422 = vunpack.c.l.b16 %v193
        %v423 = vunpack.c.l.b16 %v194
        %v424 = vunpack.c.l.b16 %v195
        %v425 = vunpack.c.l.b16 %v196
        %v426 = vunpack.c.l.b16 %v197
        %v427 = vunpack.c.l.b16 %v198
        %v428 = vunpack.c.l.b16 %v199
        %v429 = vunpack.c.l.b16 %v200
        %v430 = vunpack.c.l.b16 %v201
        %v431 = vunpack.c.l.b16 %v202
        %v432 = vunpack.c.l.b16 %v203
        %v433 = vunpack.c.l.b16 %v204
        %v434 = vunpack.c.l.b16 %v205
        %v435 = vpack.c.b16 %v420, %v419
        %v436 = vpack.c.b16 %v422, %v421
        %v437 = vpack.c.b16 %v424, %v423
        %v438 = vpack.c.b16 %v426, %v425
        %v439 = vpack.c.b16 %v428, %v427
        %v440 = vpack.c.b16 %v430, %v429
        %v441 = vpack.c.b16 %v432, %v431
        %v442 = vpack.c.b16 %v434, %v433
        %v445 = vunpack.c.l.b16 %v206
        %v446 = vunpack.c.l.b16 %v207
        %v447 = vpack.c.b16 %v446, %v445
        %v449 = vsel %vm277, %v435, 0
        %v452 = vsel %vm277, %v436, 0
        %v455 = vsel %vm277, %v437, 0
        %v458 = vsel %vm277, %v438, 0
        %v461 = vsel %vm277, %v439, 0
        %v464 = vsel %vm277, %v440, 0
        %v467 = vsel %vm277, %v441, 0
        %v470 = vsel %vm277, %v442, 0
        %v473 = vsel %vm302, %v447, 0
        %475 = vmatprep.subr.bf16.mxu0 0
        %476 = vmatpush1.bf16.msra.mxu0 %v473
        %477 = vmatprep.subr.bf16.mxu0 0
        %478 = vmatpush1.bf16.msra.mxu0 0
        %479 = vmatprep.subr.bf16.mxu0 0
        %480 = vmatpush1.bf16.msra.mxu0 0
        %481 = vmatprep.subr.bf16.mxu0 0
        %482 = vmatpush1.bf16.msra.mxu0 0
        %483 = vmatprep.subr.bf16.mxu0 0
        %484 = vmatpush1.bf16.msra.mxu0 0
        %485 = vmatprep.subr.bf16.mxu0 0
        %486 = vmatpush1.bf16.msra.mxu0 0
        %487 = vmatprep.subr.bf16.mxu0 0
        %488 = vmatpush1.bf16.msra.mxu0 0
        %489 = vmatprep.subr.bf16.mxu0 0
        %490 = vmatpush1.bf16.msra.mxu0 0
        %491 = vmatprep.subr.bf16.mxu0 0
        %492 = vmatpush1.bf16.msra.mxu0 0
        %493 = vmatprep.subr.bf16.mxu0 0
        %494 = vmatpush1.bf16.msra.mxu0 0
        %495 = vmatprep.subr.bf16.mxu0 0
        %496 = vmatpush1.bf16.msra.mxu0 0
        %497 = vmatprep.subr.bf16.mxu0 0
        %498 = vmatpush1.bf16.msra.mxu0 0
        %499 = vmatprep.subr.bf16.mxu0 0
        %500 = vmatpush1.bf16.msra.mxu0 0
        %501 = vmatprep.subr.bf16.mxu0 0
        %502 = vmatpush1.bf16.msra.mxu0 0
        %503 = vmatprep.subr.bf16.mxu0 0
        %504 = vmatpush1.bf16.msra.mxu0 0
        %505 = vmatprep.subr.bf16.mxu0 0
        %506 = vmatpush1.bf16.msra.mxu0 0
        %507 = vmatprep.mubr.bf16.mxu0 0
        %508 = vmatmul.mubr.bf16.gmra.mrb[0].mxu0 %v449
        %v509 = vpop.f32.mrb[0].mxu0
        %v510 = vadd.f32 %v341, %v509
        %v511 = vpop.f32.mrb[0].mxu0
        %v512 = vpop.f32.mrb[0].mxu0
        %v513 = vadd.f32 %v344, %v512
        %v514 = vpop.f32.mrb[0].mxu0
        %515 = vmatprep.mubr.bf16.mxu0 0
        %516 = vmatmul.mubr.bf16.gmra.mrb[0].mxu0 %v452
        %v517 = vpop.f32.mrb[0].mxu0
        %v518 = vadd.f32 %v349, %v517
        %v519 = vpop.f32.mrb[0].mxu0
        %v520 = vpop.f32.mrb[0].mxu0
        %v521 = vadd.f32 %v352, %v520
        %v522 = vpop.f32.mrb[0].mxu0
        %523 = vmatprep.mubr.bf16.mxu0 0
        %524 = vmatmul.mubr.bf16.gmra.mrb[0].mxu0 %v455
        %v525 = vpop.f32.mrb[0].mxu0
        %v526 = vadd.f32 %v357, %v525
        %v527 = vpop.f32.mrb[0].mxu0
        %v528 = vpop.f32.mrb[0].mxu0
        %v529 = vadd.f32 %v360, %v528
        %v530 = vpop.f32.mrb[0].mxu0
        %531 = vmatprep.mubr.bf16.mxu0 0
        %532 = vmatmul.mubr.bf16.gmra.mrb[0].mxu0 %v458
        %v533 = vpop.f32.mrb[0].mxu0
        %v534 = vadd.f32 %v365, %v533
        %v535 = vpop.f32.mrb[0].mxu0
        %v536 = vpop.f32.mrb[0].mxu0
        %v537 = vadd.f32 %v368, %v536
        %v538 = vpop.f32.mrb[0].mxu0
        %539 = vmatprep.mubr.bf16.mxu0 0
        %540 = vmatmul.mubr.bf16.gmra.mrb[0].mxu0 %v461
        %v541 = vpop.f32.mrb[0].mxu0
        %v542 = vadd.f32 %v373, %v541
        %v543 = vpop.f32.mrb[0].mxu0
        %v544 = vpop.f32.mrb[0].mxu0
        %v545 = vadd.f32 %v376, %v544
        %v546 = vpop.f32.mrb[0].mxu0
        %547 = vmatprep.mubr.bf16.mxu0 0
        %548 = vmatmul.mubr.bf16.gmra.mrb[0].mxu0 %v464
        %v549 = vpop.f32.mrb[0].mxu0
        %v550 = vadd.f32 %v381, %v549
        %v551 = vpop.f32.mrb[0].mxu0
        %v552 = vpop.f32.mrb[0].mxu0
        %v553 = vadd.f32 %v384, %v552
        %v554 = vpop.f32.mrb[0].mxu0
        %555 = vmatprep.mubr.bf16.mxu0 0
        %556 = vmatmul.mubr.bf16.gmra.mrb[0].mxu0 %v467
        %v557 = vpop.f32.mrb[0].mxu0
        %v558 = vadd.f32 %v389, %v557
        %v559 = vpop.f32.mrb[0].mxu0
        %v560 = vpop.f32.mrb[0].mxu0
        %v561 = vadd.f32 %v392, %v560
        %v562 = vpop.f32.mrb[0].mxu0
        %563 = vmatprep.mubr.bf16.mxu0 0
        %564 = vmatmul.mubr.bf16.gmra.mrb[0].mxu0 %v470
        %v565 = vpop.f32.mrb[0].mxu0
        %v566 = vadd.f32 %v397, %v565
        %v567 = vpop.f32.mrb[0].mxu0
        %v568 = vpop.f32.mrb[0].mxu0
        %v569 = vadd.f32 %v400, %v568
        %v570 = vpop.f32.mrb[0].mxu0
        %571 = vdwg.mxu0
        %s572 = sadd.s32 %s185, 48
        %s573 = sshra.s32 %s572, 3
        %s574 = sand.u32 %s572, 7
        %s575 = smul.addr %s573, 4
        %s576 = scalar_lea.vmem %s182, %s575
        %v577 = vld [vmem:[%s576] sm:$0xf]
        %v578 = vld [vmem:[%s576 + $0x4] sm:$0xf]
        %v579 = vld [vmem:[%s576 + $0x8] sm:$0xf]
        %v580 = vld [vmem:[%s576 + $0xc] sm:$0xf]
        %v581 = vld [vmem:[%s576 + $0x10] sm:$0xf]
        %v582 = vld [vmem:[%s576 + $0x14] sm:$0xf]
        %v583 = vld [vmem:[%s576 + $0x18] sm:$0xf]
        %v584 = vld [vmem:[%s576 + $0x1c] sm:$0xf]
        %v585 = vld [vmem:[%s576 + $0x20] sm:$0xf]
        %v586 = vld [vmem:[%s576 + $0x24] sm:$0xf]
        %v587 = vld [vmem:[%s576 + $0x28] sm:$0xf]
        %v588 = vld [vmem:[%s576 + $0x2c] sm:$0xf]
        %v589 = vld [vmem:[%s576 + $0x30] sm:$0xf]
        %v590 = vld [vmem:[%s576 + $0x34] sm:$0xf]
        %v591 = vld [vmem:[%s576 + $0x38] sm:$0xf]
        %v592 = vld [vmem:[%s576 + $0x3c] sm:$0xf]
        %s593 = scalar_lea.vmem %s1, 16
        %v594 = vld [vmem:[%s593] sm:$0xf]
        %v595 = vld [vmem:[%s593 + $0x4] sm:$0x3]
        %v612 = vunpack.c.l.b16 %v577
        %v613 = vunpack.c.l.b16 %v578
        %v614 = vunpack.c.l.b16 %v579
        %v615 = vunpack.c.l.b16 %v580
        %v616 = vunpack.c.l.b16 %v581
        %v617 = vunpack.c.l.b16 %v582
        %v618 = vunpack.c.l.b16 %v583
        %v619 = vunpack.c.l.b16 %v584
        %v620 = vunpack.c.l.b16 %v585
        %v621 = vunpack.c.l.b16 %v586
        %v622 = vunpack.c.l.b16 %v587
        %v623 = vunpack.c.l.b16 %v588
        %v624 = vunpack.c.l.b16 %v589
        %v625 = vunpack.c.l.b16 %v590
        %v626 = vunpack.c.l.b16 %v591
        %v627 = vunpack.c.l.b16 %v592
        %v628 = vpack.c.b16 %v613, %v612
        %v629 = vpack.c.b16 %v615, %v614
        %v630 = vpack.c.b16 %v617, %v616
        %v631 = vpack.c.b16 %v619, %v618
        %v632 = vpack.c.b16 %v621, %v620
        %v633 = vpack.c.b16 %v623, %v622
        %v634 = vpack.c.b16 %v625, %v624
        %v635 = vpack.c.b16 %v627, %v626
        %v638 = vunpack.c.l.b16 %v594
        %v639 = vunpack.c.l.b16 %v595
        %v640 = vpack.c.b16 %v639, %v638
        %v642 = vsel %vm277, %v628, 0
        %v645 = vsel %vm277, %v629, 0
        %v648 = vsel %vm277, %v630, 0
        %v651 = vsel %vm277, %v631, 0
        %v654 = vsel %vm277, %v632, 0
        %v657 = vsel %vm277, %v633, 0
        %v660 = vsel %vm277, %v634, 0
        %v663 = vsel %vm277, %v635, 0
        %v666 = vsel %vm302, %v640, 0
        %668 = vmatprep.subr.bf16.mxu0 0
        %669 = vmatpush1.bf16.msra.mxu0 %v666
        %670 = vmatprep.subr.bf16.mxu0 0
        %671 = vmatpush1.bf16.msra.mxu0 0
        %672 = vmatprep.subr.bf16.mxu0 0
        %673 = vmatpush1.bf16.msra.mxu0 0
        %674 = vmatprep.subr.bf16.mxu0 0
        %675 = vmatpush1.bf16.msra.mxu0 0
        %676 = vmatprep.subr.bf16.mxu0 0
        %677 = vmatpush1.bf16.msra.mxu0 0
        %678 = vmatprep.subr.bf16.mxu0 0
        %679 = vmatpush1.bf16.msra.mxu0 0
        %680 = vmatprep.subr.bf16.mxu0 0
        %681 = vmatpush1.bf16.msra.mxu0 0
        %682 = vmatprep.subr.bf16.mxu0 0
        %683 = vmatpush1.bf16.msra.mxu0 0
        %684 = vmatprep.subr.bf16.mxu0 0
        %685 = vmatpush1.bf16.msra.mxu0 0
        %686 = vmatprep.subr.bf16.mxu0 0
        %687 = vmatpush1.bf16.msra.mxu0 0
        %688 = vmatprep.subr.bf16.mxu0 0
        %689 = vmatpush1.bf16.msra.mxu0 0
        %690 = vmatprep.subr.bf16.mxu0 0
        %691 = vmatpush1.bf16.msra.mxu0 0
        %692 = vmatprep.subr.bf16.mxu0 0
        %693 = vmatpush1.bf16.msra.mxu0 0
        %694 = vmatprep.subr.bf16.mxu0 0
        %695 = vmatpush1.bf16.msra.mxu0 0
        %696 = vmatprep.subr.bf16.mxu0 0
        %697 = vmatpush1.bf16.msra.mxu0 0
        %698 = vmatprep.subr.bf16.mxu0 0
        %699 = vmatpush1.bf16.msra.mxu0 0
        %700 = vmatprep.mubr.bf16.mxu0 0
        %701 = vmatmul.mubr.bf16.gmra.mrb[0].mxu0 %v642
        %v702 = vpop.f32.mrb[0].mxu0
        %v703 = vadd.f32 0.0, %v702
        %v704 = vpop.f32.mrb[0].mxu0
        %v705 = vpop.f32.mrb[0].mxu0
        %v706 = vadd.f32 0.0, %v705
        %v707 = vpop.f32.mrb[0].mxu0
        %708 = vmatprep.mubr.bf16.mxu0 0
        %709 = vmatmul.mubr.bf16.gmra.mrb[0].mxu0 %v645
        %v710 = vpop.f32.mrb[0].mxu0
        %v711 = vadd.f32 0.0, %v710
        %v712 = vpop.f32.mrb[0].mxu0
        %v713 = vpop.f32.mrb[0].mxu0
        %v714 = vadd.f32 0.0, %v713
        %v715 = vpop.f32.mrb[0].mxu0
        %716 = vmatprep.mubr.bf16.mxu0 0
        %717 = vmatmul.mubr.bf16.gmra.mrb[0].mxu0 %v648
        %v718 = vpop.f32.mrb[0].mxu0
        %v719 = vadd.f32 0.0, %v718
        %v720 = vpop.f32.mrb[0].mxu0
        %v721 = vpop.f32.mrb[0].mxu0
        %v722 = vadd.f32 0.0, %v721
        %v723 = vpop.f32.mrb[0].mxu0
        %724 = vmatprep.mubr.bf16.mxu0 0
        %725 = vmatmul.mubr.bf16.gmra.mrb[0].mxu0 %v651
        %v726 = vpop.f32.mrb[0].mxu0
        %v727 = vadd.f32 0.0, %v726
        %v728 = vpop.f32.mrb[0].mxu0
        %v729 = vpop.f32.mrb[0].mxu0
        %v730 = vadd.f32 0.0, %v729
        %v731 = vpop.f32.mrb[0].mxu0
        %732 = vmatprep.mubr.bf16.mxu0 0
        %733 = vmatmul.mubr.bf16.gmra.mrb[0].mxu0 %v654
        %v734 = vpop.f32.mrb[0].mxu0
        %v735 = vadd.f32 0.0, %v734
        %v736 = vpop.f32.mrb[0].mxu0
        %v737 = vpop.f32.mrb[0].mxu0
        %v738 = vadd.f32 0.0, %v737
        %v739 = vpop.f32.mrb[0].mxu0
        %740 = vmatprep.mubr.bf16.mxu0 0
        %741 = vmatmul.mubr.bf16.gmra.mrb[0].mxu0 %v657
        %v742 = vpop.f32.mrb[0].mxu0
        %v743 = vadd.f32 0.0, %v742
        %v744 = vpop.f32.mrb[0].mxu0
        %v745 = vpop.f32.mrb[0].mxu0
        %v746 = vadd.f32 0.0, %v745
        %v747 = vpop.f32.mrb[0].mxu0
        %748 = vmatprep.mubr.bf16.mxu0 0
        %749 = vmatmul.mubr.bf16.gmra.mrb[0].mxu0 %v660
        %v750 = vpop.f32.mrb[0].mxu0
        %v751 = vadd.f32 0.0, %v750
        %v752 = vpop.f32.mrb[0].mxu0
        %v753 = vpop.f32.mrb[0].mxu0
        %v754 = vadd.f32 0.0, %v753
        %v755 = vpop.f32.mrb[0].mxu0
        %756 = vmatprep.mubr.bf16.mxu0 0
        %757 = vmatmul.mubr.bf16.gmra.mrb[0].mxu0 %v663
        %v758 = vpop.f32.mrb[0].mxu0
        %v759 = vadd.f32 0.0, %v758
        %v760 = vpop.f32.mrb[0].mxu0
        %v761 = vpop.f32.mrb[0].mxu0
        %v762 = vadd.f32 0.0, %v761
        %v763 = vpop.f32.mrb[0].mxu0
        %764 = vdwg.mxu0
        %v765 = vadd.f32 %v510, %v703
        %v766 = vadd.f32 %v513, %v706
        %v767 = vadd.f32 %v518, %v711
        %v768 = vadd.f32 %v521, %v714
        %v769 = vadd.f32 %v526, %v719
        %v770 = vadd.f32 %v529, %v722
        %v771 = vadd.f32 %v534, %v727
        %v772 = vadd.f32 %v537, %v730
        %v773 = vadd.f32 %v542, %v735
        %v774 = vadd.f32 %v545, %v738
        %v775 = vadd.f32 %v550, %v743
        %v776 = vadd.f32 %v553, %v746
        %v777 = vadd.f32 %v558, %v751
        %v778 = vadd.f32 %v561, %v754
        %v779 = vadd.f32 %v566, %v759
        %v780 = vadd.f32 %v569, %v762
        %v781 = vld [vmem:[%s2] sm:$0x1]
        %v783 = vlaneseq
        %v784 = vshrl.u32 %v783, 7
        %v785 = vsub.s32 0, %v784
        %v786 = vrot.slane %v781, %v785
        %v788 = vadd.f32 %v765, %v786
        %v789 = vadd.f32 %v766, %v786
        %v790 = vadd.f32 %v767, %v786
        %v791 = vadd.f32 %v768, %v786
        %v792 = vadd.f32 %v769, %v786
        %v793 = vadd.f32 %v770, %v786
        %v794 = vadd.f32 %v771, %v786
        %v795 = vadd.f32 %v772, %v786
        %v796 = vadd.f32 %v773, %v786
        %v797 = vadd.f32 %v774, %v786
        %v798 = vadd.f32 %v775, %v786
        %v799 = vadd.f32 %v776, %v786
        %v800 = vadd.f32 %v777, %v786
        %v801 = vadd.f32 %v778, %v786
        %v802 = vadd.f32 %v779, %v786
        %v803 = vadd.f32 %v780, %v786
        %v804 = vmul.f32 %v788, 0.1
        %v805 = vmul.f32 %v789, 0.1
        %v806 = vmul.f32 %v790, 0.1
        %v807 = vmul.f32 %v791, 0.1
        %v808 = vmul.f32 %v792, 0.1
        %v809 = vmul.f32 %v793, 0.1
        %v810 = vmul.f32 %v794, 0.1
        %v811 = vmul.f32 %v795, 0.1
        %v812 = vmul.f32 %v796, 0.1
        %v813 = vmul.f32 %v797, 0.1
        %v814 = vmul.f32 %v798, 0.1
        %v815 = vmul.f32 %v799, 0.1
        %v816 = vmul.f32 %v800, 0.1
        %v817 = vmul.f32 %v801, 0.1
        %v818 = vmul.f32 %v802, 0.1
        %v819 = vmul.f32 %v803, 0.1
        %v820 = vmax.f32 %v788, %v804
        %v821 = vmax.f32 %v789, %v805
        %v822 = vmax.f32 %v790, %v806
        %v823 = vmax.f32 %v791, %v807
        %v824 = vmax.f32 %v792, %v808
        %v825 = vmax.f32 %v793, %v809
        %v826 = vmax.f32 %v794, %v810
        %v827 = vmax.f32 %v795, %v811
        %v828 = vmax.f32 %v796, %v812
        %v829 = vmax.f32 %v797, %v813
        %v830 = vmax.f32 %v798, %v814
        %v831 = vmax.f32 %v799, %v815
        %v832 = vmax.f32 %v800, %v816
        %v833 = vmax.f32 %v801, %v817
        %v834 = vmax.f32 %v802, %v818
        %v835 = vmax.f32 %v803, %v819
        %v836 = vpack.c.bf16 %v821, %v820
        %v837 = vpack.c.bf16 %v823, %v822
        %v838 = vpack.c.bf16 %v825, %v824
        %v839 = vpack.c.bf16 %v827, %v826
        %v840 = vpack.c.bf16 %v829, %v828
        %v841 = vpack.c.bf16 %v831, %v830
        %v842 = vpack.c.bf16 %v833, %v832
        %v843 = vpack.c.bf16 %v835, %v834
        %v852 = vunpack.c.l.b16 %v836
        %v853 = vunpack.c.h.b16 %v836
        %v854 = vunpack.c.l.b16 %v837
        %v855 = vunpack.c.h.b16 %v837
        %v856 = vunpack.c.l.b16 %v838
        %v857 = vunpack.c.h.b16 %v838
        %v858 = vunpack.c.l.b16 %v839
        %v859 = vunpack.c.h.b16 %v839
        %v860 = vunpack.c.l.b16 %v840
        %v861 = vunpack.c.h.b16 %v840
        %v862 = vunpack.c.l.b16 %v841
        %v863 = vunpack.c.h.b16 %v841
        %v864 = vunpack.c.l.b16 %v842
        %v865 = vunpack.c.h.b16 %v842
        %v866 = vunpack.c.l.b16 %v843
        %v867 = vunpack.c.h.b16 %v843
        %v868 = vpack.c.b16 %v852, %v852
        %v869 = vpack.c.b16 %v853, %v853
        %v870 = vpack.c.b16 %v854, %v854
        %v871 = vpack.c.b16 %v855, %v855
        %v872 = vpack.c.b16 %v856, %v856
        %v873 = vpack.c.b16 %v857, %v857
        %v874 = vpack.c.b16 %v858, %v858
        %v875 = vpack.c.b16 %v859, %v859
        %v876 = vpack.c.b16 %v860, %v860
        %v877 = vpack.c.b16 %v861, %v861
        %v878 = vpack.c.b16 %v862, %v862
        %v879 = vpack.c.b16 %v863, %v863
        %v880 = vpack.c.b16 %v864, %v864
        %v881 = vpack.c.b16 %v865, %v865
        %v882 = vpack.c.b16 %v866, %v866
        %v883 = vpack.c.b16 %v867, %v867
        %900 = vst [vmem:[%s177] sm:$0xf] %v868
        %901 = vst [vmem:[%s177 + $0x4] sm:$0xf] %v869
        %902 = vst [vmem:[%s177 + $0x8] sm:$0xf] %v870
        %903 = vst [vmem:[%s177 + $0xc] sm:$0xf] %v871
        %904 = vst [vmem:[%s177 + $0x10] sm:$0xf] %v872
        %905 = vst [vmem:[%s177 + $0x14] sm:$0xf] %v873
        %906 = vst [vmem:[%s177 + $0x18] sm:$0xf] %v874
        %907 = vst [vmem:[%s177 + $0x1c] sm:$0xf] %v875
        %908 = vst [vmem:[%s177 + $0x20] sm:$0xf] %v876
        %909 = vst [vmem:[%s177 + $0x24] sm:$0xf] %v877
        %910 = vst [vmem:[%s177 + $0x28] sm:$0xf] %v878
        %911 = vst [vmem:[%s177 + $0x2c] sm:$0xf] %v879
        %912 = vst [vmem:[%s177 + $0x30] sm:$0xf] %v880
        %913 = vst [vmem:[%s177 + $0x34] sm:$0xf] %v881
        %914 = vst [vmem:[%s177 + $0x38] sm:$0xf] %v882
        %915 = vst [vmem:[%s177 + $0x3c] sm:$0xf] %v883
        %s916 = sand.u32 %s107, 1
        %s917 = scalar_lea.sflag [#allocation3], %s916
        %s918 = sand.u32 %s107, 1
        %s919 = smul.addr %s918, 64
        %s920 = scalar_lea.vmem [#allocation2], %s919
        // Predicated region
        $region33: #{tpu_custom_call.1} parent=31 // pred_check
          %p921 = pneg %p117
        $region34: #{tpu_custom_call.1} parent=31 // pred_check_branch
          %923 = sbr.rel (%p921) target = $region36
        $region35: #{tpu_custom_call.1} parent=31 // pred_region
          %s924 = smul.u32 16, %s22
          %s926 = ssub.s32 1024, 1024
          %927 = vsyncadd %s917, %s926
          %s928 = smul.addr %s21, 48
          %s929 = sadd.s32 %s924, %s928
          %s930 = smul.addr %s929, 64
          %s931 = scalar_lea.hbm %s3, %s930
          %s932 = sshll.u32 %s920, 4
          %s933 = int_to_ptr.vmem [resolvable:$true] %s932
          %938 = dma.vmem_to_hbm [thread:$0]  %s933, 1024, %s931, %s917, 64, 64, 4
        $region36: #{tpu_custom_call.1} parent=31 // pred_fallthru
          _
      $region32: #{tpu_custom_call.1} parent=5 // pred_fallthru
        _
      %p939 = scmp.le.s32.totalorder 2, %s12
      // Predicated region
      $region37: #{tpu_custom_call.1} parent=5 // pred_check
        %p940 = pneg %p939
      $region38: #{tpu_custom_call.1} parent=5 // pred_check_branch
        %942 = sbr.rel (%p940) target = $region40
      $region39: #{tpu_custom_call.1} parent=5 // pred_region
        %s943 = ssub.s32 %s12, 2
        // Predicated region
        $region41: #{tpu_custom_call.1} parent=39 // pred_check
          %p944 = pneg %p123
        $region42: #{tpu_custom_call.1} parent=39 // pred_check_branch
          %946 = sbr.rel (%p944) target = $region44
        $region43: #{tpu_custom_call.1} parent=39 // pred_region
          %s947 = sand.u32 %s108, 1
          %s948 = scalar_lea.sflag [#allocation3], %s947
          %s949 = sand.u32 %s108, 1
          %s950 = smul.addr %s949, 64
          %s951 = scalar_lea.vmem [#allocation2], %s950
          %952 = dma.done %s948, 1024
        $region44: #{tpu_custom_call.1} parent=39 // pred_fallthru
          _
      $region40: #{tpu_custom_call.1} parent=5 // pred_fallthru
        _
    $region6: #{tpu_custom_call.1} parent=1 // loop_footer
      %s16 = sadd.s32 1, %s12
    $region7: #{tpu_custom_call.1} parent=1 // loop_footer_branch
      %11 = sbr.rel target = $region3
    $region8: #{tpu_custom_call.1} parent=1 // loop_exit
      _
    %953 = vsyncpa [#allocation3], 1
    %s954 = scalar_lea.sflag [#allocation3], 1
    %955 = vsyncpa %s954, 1

</llo_original>
